<compile_context>
chip_gen: v7x
topology: tpu7x:2x2x1
jax: 0.10.0
libtpu: 0.0.40
codegen_flags: <defaults>
</compile_context>

<pallas_src>
import functools

import jax
import jax.numpy as jnp
from jax.experimental import pallas as pl
from jax.experimental.pallas import tpu as pltpu


_BLOCK_BYTE_BUDGET = 4 * 1024 * 1024      # per input block (double-buffered)
_VMEM_LIMIT_BYTES = 32 * 1024 * 1024      # safe on v5e/v6e (128 MiB) and v7x (64 MiB)
_FAST_PATH_BYTES = 4 * 1024 * 1024        # f32 working-set threshold for fused path


# --------------------------------------------------------------------------
# Fast path: whole problem fits in VMEM -> one fused kernel (stats + normalize).
# --------------------------------------------------------------------------
def _fused_kernel(x_ref, w_ref, b_ref, o_ref, *, eps):
    xt = x_ref[...].astype(jnp.float32)                  # (n, s)
    n = xt.shape[0]
    sum_x = jnp.sum(xt, axis=0, keepdims=True)           # (1, s)
    sumsq_x = jnp.sum(xt * xt, axis=0, keepdims=True)    # (1, s)
    mean = sum_x / n
    # NOTE: E[x^2]-E[x]^2 in f32 (clamped >= 0). TODO(synk): Welford / centered
    # second pass if inputs may have |mean| >> std.
    var = jnp.maximum(sumsq_x / n - mean * mean, 0.0)
    inv_std = jax.lax.rsqrt(var + eps)
    scale = w_ref[...] * inv_std
    shift = b_ref[...] - mean * scale
    o_ref[...] = (xt * scale + shift).astype(o_ref.dtype)


# --------------------------------------------------------------------------
# Pass 1: per-lane sum / sum-of-squares partial reduction over row blocks.
# Grid = (C "parallel" chunks, inner "arbitrary" steps). Each chunk accumulates
# into its own (8, W) slab of the (C*8, W) outputs (combined later in JAX glue).
# --------------------------------------------------------------------------
def _stats_kernel(x_ref, sum_ref, sumsq_ref, *, rows, tn, inner, has_tail):
    c = pl.program_id(0)
    i = pl.program_id(1)

    @pl.when(i == 0)
    def _():
        sum_ref[...] = jnp.zeros_like(sum_ref)
        sumsq_ref[...] = jnp.zeros_like(sumsq_ref)

    xt = x_ref[...].astype(jnp.float32)                  # (tn, W)
    if has_tail:
        block_id = c * inner + i
        valid = rows - block_id * tn                     # rows valid in this block
        row_ids = jax.lax.broadcasted_iota(jnp.int32, xt.shape, 0)
        xt = jnp.where(row_ids < valid, xt, 0.0)

    w = xt.shape[1]
    xg = xt.reshape(tn // 8, 8, w)                       # sublane-aligned regroup
    sum_ref[...] += jnp.sum(xg, axis=0)                  # (8, W)
    sumsq_ref[...] += jnp.sum(xg * xg, axis=0)           # (8, W)


# --------------------------------------------------------------------------
# Pass 2: elementwise y = x * scale + shift  (scale/shift already lane-folded).
# --------------------------------------------------------------------------
def _normalize_kernel(x_ref, scale_ref, shift_ref, o_ref):
    xt = x_ref[...].astype(jnp.float32)
    o_ref[...] = (xt * scale_ref[...] + shift_ref[...]).astype(o_ref.dtype)


def _pick_row_tile(rows, width, itemsize, block_rows=None):
    granule = {4: 8, 2: 16, 1: 32}.get(int(itemsize), 8)
    if block_rows is not None:
        tn = max(granule, (int(block_rows) // granule) * granule)
    else:
        tn = max(granule, (_BLOCK_BYTE_BUDGET // (width * itemsize)) // granule * granule)
    rows_g = pl.cdiv(rows, granule) * granule
    return min(tn, rows_g)


def batch_norm_last_dim(x, weight, bias, eps=1e-5, *,
                        force_two_pass=False, block_rows=None):
    """Pallas implementation of BatchNormLastDim.forward (training-mode BN)."""
    s = weight.shape[0]
    init_dim = x.shape
    if init_dim[-1] != s:
        raise ValueError(
            "batch norm last dim does not have right shape. "
            "should be {}, but is {}".format(s, init_dim[-1]))

    n = 1
    for d in init_dim[:-1]:
        n *= int(d)
    x_flat = x.reshape((n, s))
    w32 = weight.astype(jnp.float32).reshape(1, s)
    b32 = bias.astype(jnp.float32).reshape(1, s)

    # ---------------- small-input fused fast path -------------------------
    if (not force_two_pass) and n * s * 4 <= _FAST_PATH_BYTES:
        y_flat = pl.pallas_call(
            functools.partial(_fused_kernel, eps=float(eps)),
            out_shape=jax.ShapeDtypeStruct((n, s), x.dtype),
            grid_spec=pltpu.PrefetchScalarGridSpec(
                num_scalar_prefetch=0,
                grid=(1,),
                in_specs=[pl.BlockSpec((n, s), lambda i: (0, 0)),
                          pl.BlockSpec((1, s), lambda i: (0, 0)),
                          pl.BlockSpec((1, s), lambda i: (0, 0))],
                out_specs=pl.BlockSpec((n, s), lambda i: (0, 0))),
            compiler_params=pltpu.CompilerParams(
                dimension_semantics=("arbitrary",),
                vmem_limit_bytes=_VMEM_LIMIT_BYTES),
        )(x_flat, w32, b32)
        return y_flat.reshape(init_dim)

    # ---------------- lane densification (fold rows into lanes) -----------
    k = 1
    if s < 128 and 128 % s == 0:
        kk = 128 // s
        if n % kk == 0:
            k = kk
    W = k * s
    rows = n // k
    x_fold = x_flat.reshape(rows, W)          # contiguity-preserving, no copy

    itemsize = jnp.dtype(x.dtype).itemsize
    tn = _pick_row_tile(rows, W, itemsize, block_rows)
    num_blocks = pl.cdiv(rows, tn)
    has_tail = (rows % tn) != 0

    # Partial-sum chunks: only pays off on multi-TC parts (v7x), harmless elsewhere.
    C = 1
    for c in (8, 4, 2):
        if num_blocks % c == 0:
            C = c
            break
    inner = num_blocks // C

    # ---------------- pass 1: partial sums / sum-of-squares ---------------
    stats_kernel = functools.partial(
        _stats_kernel, rows=rows, tn=tn, inner=inner, has_tail=has_tail)
    sum_out, sumsq_out = pl.pallas_call(
        stats_kernel,
        out_shape=(jax.ShapeDtypeStruct((C * 8, W), jnp.float32),
                   jax.ShapeDtypeStruct((C * 8, W), jnp.float32)),
        grid_spec=pltpu.PrefetchScalarGridSpec(
            num_scalar_prefetch=0,
            grid=(C, inner),
            in_specs=[pl.BlockSpec((tn, W), lambda c, i: (c * inner + i, 0))],
            out_specs=(pl.BlockSpec((8, W), lambda c, i: (c, 0)),
                       pl.BlockSpec((8, W), lambda c, i: (c, 0)))),
        compiler_params=pltpu.CompilerParams(
            dimension_semantics=("parallel", "arbitrary"),
            vmem_limit_bytes=_VMEM_LIMIT_BYTES),
    )(x_fold)

    # ---------------- tiny per-feature scalar glue in plain JAX -----------
    sum_s = jnp.sum(sum_out, axis=0).reshape(k, s).sum(axis=0)        # (s,)
    sumsq_s = jnp.sum(sumsq_out, axis=0).reshape(k, s).sum(axis=0)    # (s,)
    n_f = jnp.float32(n)
    mean = sum_s / n_f
    var = jnp.maximum(sumsq_s / n_f - mean * mean, 0.0)   # biased var (PyTorch fwd)
    inv_std = jax.lax.rsqrt(var + jnp.float32(eps))
    scale = w32.reshape(s) * inv_std
    shift = b32.reshape(s) - mean * scale
    scale_w = jnp.tile(scale.reshape(1, s), (1, k))       # (1, W) lane-folded
    shift_w = jnp.tile(shift.reshape(1, s), (1, k))       # (1, W)

    # ---------------- pass 2: elementwise normalize ------------------------
    y_fold = pl.pallas_call(
        _normalize_kernel,
        out_shape=jax.ShapeDtypeStruct((rows, W), x.dtype),
        grid_spec=pltpu.PrefetchScalarGridSpec(
            num_scalar_prefetch=0,
            grid=(num_blocks,),
            in_specs=[pl.BlockSpec((tn, W), lambda i: (i, 0)),
                      pl.BlockSpec((1, W), lambda i: (0, 0)),
                      pl.BlockSpec((1, W), lambda i: (0, 0))],
            out_specs=pl.BlockSpec((tn, W), lambda i: (i, 0))),
        compiler_params=pltpu.CompilerParams(
            dimension_semantics=("parallel",),
            vmem_limit_bytes=_VMEM_LIMIT_BYTES),
    )(x_fold, scale_w, shift_w)

    return y_fold.reshape(init_dim)


if __name__ == "__main__":
    key = jax.random.PRNGKey(0)
    key1, key2 = jax.random.split(key)
    s = 32
    eps = 1e-5

    # Deterministic affine parameters (PyTorch default init is ones / zeros;
    # use slightly non-trivial deterministic values to exercise the affine).
    weight = 1.0 + 0.01 * jnp.arange(s, dtype=jnp.float32)
    bias = 0.1 * jnp.arange(s, dtype=jnp.float32)

    def reference(x):
        xf = x.reshape(-1, s)
        mean = jnp.mean(xf, axis=0, keepdims=True)
        var = jnp.mean((xf - mean) ** 2, axis=0, keepdims=True)
        return ((xf - mean) / jnp.sqrt(var + eps) * weight + bias).reshape(x.shape)

    # 1) small input -> fused single-kernel fast path
    x1 = jax.random.normal(key1, (2, 4, 16, s), dtype=jnp.float32)
    y1 = jax.block_until_ready(batch_norm_last_dim(x1, weight, bias, eps))
    assert y1.shape == x1.shape and y1.dtype == x1.dtype
    assert jnp.max(jnp.abs(y1 - reference(x1))) < 1e-4, "fast path mismatch"

    # 2) force the two-pass tiled path: exercises lane folding (k=4, W=128),
    #    cdiv grid with a masked tail block and the parallel partial-sum chunks.
    x2 = jax.random.normal(key2, (2, 100, s), dtype=jnp.float32)
    y2 = jax.block_until_ready(
        batch_norm_last_dim(x2, weight, bias, eps,
                            force_two_pass=True, block_rows=16))
    assert y2.shape == x2.shape and y2.dtype == x2.dtype
    assert jnp.max(jnp.abs(y2 - reference(x2))) < 1e-4, "two-pass path mismatch"

    print("KERNEL_OK")
</pallas_src>

<mosaic_0001>
module attributes {stable_mosaic.version = 11 : i64} {
  func.func @_fused_kernel(%arg0: i32, %arg1: memref<128x32xf32, #tpu.memory_space<vmem>>, %arg2: memref<1x32xf32, #tpu.memory_space<vmem>>, %arg3: memref<1x32xf32, #tpu.memory_space<vmem>>, %arg4: memref<128x32xf32, #tpu.memory_space<vmem>>) attributes {dimension_semantics = [#tpu.dimension_semantics<arbitrary>], iteration_bounds = array<i64: 1>, scalar_prefetch = 0 : i64, scratch_operands = 0 : i64, tpu.core_type = #tpu.core_type<tc>, window_params = [{pipeline_mode = #tpu.pipeline_mode<synchronous>, transform_indices = @transform_0, window_bounds = array<i64: 128, 32>}, {pipeline_mode = #tpu.pipeline_mode<synchronous>, transform_indices = @transform_1, window_bounds = array<i64: 1, 32>}, {pipeline_mode = #tpu.pipeline_mode<synchronous>, transform_indices = @transform_2, window_bounds = array<i64: 1, 32>}, {pipeline_mode = #tpu.pipeline_mode<synchronous>, transform_indices = @transform_3, window_bounds = array<i64: 128, 32>}]} {
    %c0 = arith.constant 0 : index
    %c0_0 = arith.constant 0 : index
    %0 = vector.load %arg1[%c0, %c0_0] : memref<128x32xf32, #tpu.memory_space<vmem>>, vector<128x32xf32>
    %cst = arith.constant dense<0.000000e+00> : vector<32xf32>
    %1 = vector.multi_reduction <add>, %0, %cst [0] : vector<128x32xf32> to vector<32xf32>
    %2 = vector.shape_cast %1 : vector<32xf32> to vector<1x32xf32>
    %3 = arith.mulf %0, %0 : vector<128x32xf32>
    %cst_1 = arith.constant dense<0.000000e+00> : vector<32xf32>
    %4 = vector.multi_reduction <add>, %3, %cst_1 [0] : vector<128x32xf32> to vector<32xf32>
    %5 = vector.shape_cast %4 : vector<32xf32> to vector<1x32xf32>
    %cst_2 = arith.constant 1.280000e+02 : f32
    %6 = vector.broadcast %cst_2 : f32 to vector<1x32xf32>
    %7 = arith.divf %2, %6 : vector<1x32xf32>
    %cst_3 = arith.constant 1.280000e+02 : f32
    %8 = vector.broadcast %cst_3 : f32 to vector<1x32xf32>
    %9 = arith.divf %5, %8 : vector<1x32xf32>
    %10 = arith.mulf %7, %7 : vector<1x32xf32>
    %11 = arith.subf %9, %10 : vector<1x32xf32>
    %cst_4 = arith.constant 0.000000e+00 : f32
    %12 = vector.broadcast %cst_4 : f32 to vector<1x32xf32>
    %13 = arith.maximumf %11, %12 : vector<1x32xf32>
    %cst_5 = arith.constant 9.99999974E-6 : f32
    %14 = vector.broadcast %cst_5 : f32 to vector<1x32xf32>
    %15 = arith.addf %13, %14 : vector<1x32xf32>
    %16 = math.rsqrt %15 : vector<1x32xf32>
    %c0_6 = arith.constant 0 : index
    %c0_7 = arith.constant 0 : index
    %17 = vector.load %arg2[%c0_6, %c0_7] : memref<1x32xf32, #tpu.memory_space<vmem>>, vector<1x32xf32>
    %18 = arith.mulf %17, %16 : vector<1x32xf32>
    %c0_8 = arith.constant 0 : index
    %c0_9 = arith.constant 0 : index
    %19 = vector.load %arg3[%c0_8, %c0_9] : memref<1x32xf32, #tpu.memory_space<vmem>>, vector<1x32xf32>
    %20 = arith.mulf %7, %18 : vector<1x32xf32>
    %21 = arith.subf %19, %20 : vector<1x32xf32>
    %22 = vector.broadcast %18 : vector<1x32xf32> to vector<128x32xf32>
    %23 = arith.mulf %0, %22 : vector<128x32xf32>
    %24 = vector.broadcast %21 : vector<1x32xf32> to vector<128x32xf32>
    %25 = arith.addf %23, %24 : vector<128x32xf32>
    %c0_10 = arith.constant 0 : index
    %c0_11 = arith.constant 0 : index
    %26 = vector.load %arg4[%c0_10, %c0_11] : memref<128x32xf32, #tpu.memory_space<vmem>>, vector<128x32xf32>
    tpu.vector_store %arg4[%c0_10, %c0_11], %25 {strides = array<i32>} : memref<128x32xf32, #tpu.memory_space<vmem>>, vector<128x32xf32>,
    return
  }
  func.func @transform_0(%arg0: i32) -> (i32, i32) {
    %c0_i32 = arith.constant 0 : i32
    %c0_i32_0 = arith.constant 0 : i32
    %c0_i32_1 = arith.constant 0 : i32
    return %c0_i32, %c0_i32_0 : i32, i32
  }
  func.func @transform_1(%arg0: i32) -> (i32, i32) {
    %c0_i32 = arith.constant 0 : i32
    %c0_i32_0 = arith.constant 0 : i32
    %c0_i32_1 = arith.constant 0 : i32
    return %c0_i32, %c0_i32_0 : i32, i32
  }
  func.func @transform_2(%arg0: i32) -> (i32, i32) {
    %c0_i32 = arith.constant 0 : i32
    %c0_i32_0 = arith.constant 0 : i32
    %c0_i32_1 = arith.constant 0 : i32
    return %c0_i32, %c0_i32_0 : i32, i32
  }
  func.func @transform_3(%arg0: i32) -> (i32, i32) {
    %c0_i32 = arith.constant 0 : i32
    %c0_i32_0 = arith.constant 0 : i32
    %c0_i32_1 = arith.constant 0 : i32
    return %c0_i32, %c0_i32_0 : i32, i32
  }
}

</mosaic_0001>

<llo_original>
// kernel: tpu_custom_call.1
$region0: #{tpu_custom_call.1}
  #allocation0 [shape = 'u32[]', space=smem, size = 0x4, offset = 0x4, fixed_abs, tag = 'smem constant byte address 0x4 - core index']
  #allocation1 [shape = 'u32[144,128]{1,0:T(1,128)}', space=vmem, size = 0x12000, scoped, tag = 'internal scratch']
  %s0 = inlined_call_operand.vmem [shape: f32[128,32], index: 0, kind: input, shape index: {}]
  %s1 = inlined_call_operand.vmem [shape: f32[1,32], index: 1, kind: input, shape index: {}]
  %s2 = inlined_call_operand.vmem [shape: f32[1,32], index: 2, kind: input, shape index: {}]
  %s3 = inlined_call_operand.vmem [shape: f32[128,32], index: 3, kind: output, shape index: {}]
  %s4 = sld [smem:[#allocation0]]
  $region22: #{tpu_custom_call.1} parent=0
    _
  %s6 = ssub.s32 1, %s4
  %s7 = scalar_select 0, %s6, %s4
  // Predicated region
  $region2: #{tpu_custom_call.1} parent=0 // pred_check
    _
  $region3: #{tpu_custom_call.1} parent=0 // pred_check_branch
    %9 = sbr.rel (0) target = $region5
  $region4: #{tpu_custom_call.1} parent=0 // pred_region
    _
  $region5: #{tpu_custom_call.1} parent=0 // pred_fallthru
    _
  // Predicated region
  $region6: #{tpu_custom_call.1} parent=0 // pred_check
    _
  $region7: #{tpu_custom_call.1} parent=0 // pred_check_branch
    %11 = sbr.rel (0) target = $region9
  $region8: #{tpu_custom_call.1} parent=0 // pred_region
    _
  $region9: #{tpu_custom_call.1} parent=0 // pred_fallthru
    _
  // Predicated region
  $region10: #{tpu_custom_call.1} parent=0 // pred_check
    _
  $region11: #{tpu_custom_call.1} parent=0 // pred_check_branch
    %13 = sbr.rel (0) target = $region13
  $region12: #{tpu_custom_call.1} parent=0 // pred_region
    _
  $region13: #{tpu_custom_call.1} parent=0 // pred_fallthru
    _
  %v14 = vld [vmem:[%s0] sm:$0xff]
  %v15 = vld [vmem:[%s0 + $0x8] sm:$0xff]
  %v16 = vld [vmem:[%s0 + $0x10] sm:$0xff]
  %v17 = vld [vmem:[%s0 + $0x18] sm:$0xff]
  %v18 = vld [vmem:[%s0 + $0x20] sm:$0xff]
  %v19 = vld [vmem:[%s0 + $0x28] sm:$0xff]
  %v20 = vld [vmem:[%s0 + $0x30] sm:$0xff]
  %v21 = vld [vmem:[%s0 + $0x38] sm:$0xff]
  %v22 = vld [vmem:[%s0 + $0x40] sm:$0xff]
  %v23 = vld [vmem:[%s0 + $0x48] sm:$0xff]
  %v24 = vld [vmem:[%s0 + $0x50] sm:$0xff]
  %v25 = vld [vmem:[%s0 + $0x58] sm:$0xff]
  %v26 = vld [vmem:[%s0 + $0x60] sm:$0xff]
  %v27 = vld [vmem:[%s0 + $0x68] sm:$0xff]
  %v28 = vld [vmem:[%s0 + $0x70] sm:$0xff]
  %v29 = vld [vmem:[%s0 + $0x78] sm:$0xff]
  %vm30 = vcmask 261120
  %v31 = vsel %vm30, %v14, 0.0
  %v32 = vsel %vm30, %v15, 0.0
  %v33 = vadd.f32 %v31, %v32
  %v34 = vsel %vm30, %v16, 0.0
  %v35 = vadd.f32 %v33, %v34
  %v36 = vsel %vm30, %v17, 0.0
  %v37 = vadd.f32 %v35, %v36
  %v38 = vsel %vm30, %v18, 0.0
  %v39 = vadd.f32 %v37, %v38
  %v40 = vsel %vm30, %v19, 0.0
  %v41 = vadd.f32 %v39, %v40
  %v42 = vsel %vm30, %v20, 0.0
  %v43 = vadd.f32 %v41, %v42
  %v44 = vsel %vm30, %v21, 0.0
  %v45 = vadd.f32 %v43, %v44
  %v46 = vsel %vm30, %v22, 0.0
  %v47 = vadd.f32 %v45, %v46
  %v48 = vsel %vm30, %v23, 0.0
  %v49 = vadd.f32 %v47, %v48
  %v50 = vsel %vm30, %v24, 0.0
  %v51 = vadd.f32 %v49, %v50
  %v52 = vsel %vm30, %v25, 0.0
  %v53 = vadd.f32 %v51, %v52
  %v54 = vsel %vm30, %v26, 0.0
  %v55 = vadd.f32 %v53, %v54
  %v56 = vsel %vm30, %v27, 0.0
  %v57 = vadd.f32 %v55, %v56
  %v58 = vsel %vm30, %v28, 0.0
  %v59 = vadd.f32 %v57, %v58
  %v60 = vsel %vm30, %v29, 0.0
  %v61 = vadd.f32 %v59, %v60
  %v62 = vrot.slane %v61, 4
  %v63 = vadd.f32 %v61, %v62
  %v64 = vrot.slane %v63, 2
  %v65 = vadd.f32 %v63, %v64
  %v66 = vrot.slane %v65, 1
  %v67 = vadd.f32 %v65, %v66
  %v68 = vmul.f32 %v14, %v14
  %v69 = vmul.f32 %v15, %v15
  %v70 = vmul.f32 %v16, %v16
  %v71 = vmul.f32 %v17, %v17
  %v72 = vmul.f32 %v18, %v18
  %v73 = vmul.f32 %v19, %v19
  %v74 = vmul.f32 %v20, %v20
  %v75 = vmul.f32 %v21, %v21
  %v76 = vmul.f32 %v22, %v22
  %v77 = vmul.f32 %v23, %v23
  %v78 = vmul.f32 %v24, %v24
  %v79 = vmul.f32 %v25, %v25
  %v80 = vmul.f32 %v26, %v26
  %v81 = vmul.f32 %v27, %v27
  %v82 = vmul.f32 %v28, %v28
  %v83 = vmul.f32 %v29, %v29
  %v84 = vsel %vm30, %v68, 0.0
  %v85 = vsel %vm30, %v69, 0.0
  %v86 = vadd.f32 %v84, %v85
  %v87 = vsel %vm30, %v70, 0.0
  %v88 = vadd.f32 %v86, %v87
  %v89 = vsel %vm30, %v71, 0.0
  %v90 = vadd.f32 %v88, %v89
  %v91 = vsel %vm30, %v72, 0.0
  %v92 = vadd.f32 %v90, %v91
  %v93 = vsel %vm30, %v73, 0.0
  %v94 = vadd.f32 %v92, %v93
  %v95 = vsel %vm30, %v74, 0.0
  %v96 = vadd.f32 %v94, %v95
  %v97 = vsel %vm30, %v75, 0.0
  %v98 = vadd.f32 %v96, %v97
  %v99 = vsel %vm30, %v76, 0.0
  %v100 = vadd.f32 %v98, %v99
  %v101 = vsel %vm30, %v77, 0.0
  %v102 = vadd.f32 %v100, %v101
  %v103 = vsel %vm30, %v78, 0.0
  %v104 = vadd.f32 %v102, %v103
  %v105 = vsel %vm30, %v79, 0.0
  %v106 = vadd.f32 %v104, %v105
  %v107 = vsel %vm30, %v80, 0.0
  %v108 = vadd.f32 %v106, %v107
  %v109 = vsel %vm30, %v81, 0.0
  %v110 = vadd.f32 %v108, %v109
  %v111 = vsel %vm30, %v82, 0.0
  %v112 = vadd.f32 %v110, %v111
  %v113 = vsel %vm30, %v83, 0.0
  %v114 = vadd.f32 %v112, %v113
  %v115 = vrot.slane %v114, 4
  %v116 = vadd.f32 %v114, %v115
  %v117 = vrot.slane %v116, 2
  %v118 = vadd.f32 %v116, %v117
  %v119 = vrot.slane %v118, 1
  %v120 = vadd.f32 %v118, %v119
  %v121 = vrcp.pop 128.0
  %v122 = vmul.f32 %v67, %v121
  %v123 = vmul.f32 %v120, %v121
  %v124 = vmul.f32 %v122, %v122
  %v125 = vsub.f32 %v123, %v124
  %v126 = vmax.f32 %v125, 0.0
  %v127 = vadd.f32 %v126, 1e-05
  %v128 = vrsqrt.pop %v127
  %v129 = vld [vmem:[%s1] sm:$0x1]
  %v130 = vmul.f32 %v129, %v128
  %v131 = vld [vmem:[%s2] sm:$0x1]
  %v132 = vmul.f32 %v122, %v130
  %v133 = vsub.f32 %v131, %v132
  %v135 = vlaneseq
  %v136 = vshrl.u32 %v135, 7
  %v137 = vsub.s32 0, %v136
  %v138 = vrot.slane %v130, %v137
  %v140 = vmul.f32 %v14, %v138
  %v141 = vmul.f32 %v15, %v138
  %v142 = vmul.f32 %v16, %v138
  %v143 = vmul.f32 %v17, %v138
  %v144 = vmul.f32 %v18, %v138
  %v145 = vmul.f32 %v19, %v138
  %v146 = vmul.f32 %v20, %v138
  %v147 = vmul.f32 %v21, %v138
  %v148 = vmul.f32 %v22, %v138
  %v149 = vmul.f32 %v23, %v138
  %v150 = vmul.f32 %v24, %v138
  %v151 = vmul.f32 %v25, %v138
  %v152 = vmul.f32 %v26, %v138
  %v153 = vmul.f32 %v27, %v138
  %v154 = vmul.f32 %v28, %v138
  %v155 = vmul.f32 %v29, %v138
  %v157 = vlaneseq
  %v158 = vshrl.u32 %v157, 7
  %v159 = vsub.s32 0, %v158
  %v160 = vrot.slane %v133, %v159
  %v162 = vadd.f32 %v140, %v160
  %v163 = vadd.f32 %v141, %v160
  %v164 = vadd.f32 %v142, %v160
  %v165 = vadd.f32 %v143, %v160
  %v166 = vadd.f32 %v144, %v160
  %v167 = vadd.f32 %v145, %v160
  %v168 = vadd.f32 %v146, %v160
  %v169 = vadd.f32 %v147, %v160
  %v170 = vadd.f32 %v148, %v160
  %v171 = vadd.f32 %v149, %v160
  %v172 = vadd.f32 %v150, %v160
  %v173 = vadd.f32 %v151, %v160
  %v174 = vadd.f32 %v152, %v160
  %v175 = vadd.f32 %v153, %v160
  %v176 = vadd.f32 %v154, %v160
  %v177 = vadd.f32 %v155, %v160
  %178 = vst.msk [vmem:[%s3] sm:$0xff] %vm30, %v162
  %179 = vst.msk [vmem:[%s3 + $0x8] sm:$0xff] %vm30, %v163
  %180 = vst.msk [vmem:[%s3 + $0x10] sm:$0xff] %vm30, %v164
  %181 = vst.msk [vmem:[%s3 + $0x18] sm:$0xff] %vm30, %v165
  %182 = vst.msk [vmem:[%s3 + $0x20] sm:$0xff] %vm30, %v166
  %183 = vst.msk [vmem:[%s3 + $0x28] sm:$0xff] %vm30, %v167
  %184 = vst.msk [vmem:[%s3 + $0x30] sm:$0xff] %vm30, %v168
  %185 = vst.msk [vmem:[%s3 + $0x38] sm:$0xff] %vm30, %v169
  %186 = vst.msk [vmem:[%s3 + $0x40] sm:$0xff] %vm30, %v170
  %187 = vst.msk [vmem:[%s3 + $0x48] sm:$0xff] %vm30, %v171
  %188 = vst.msk [vmem:[%s3 + $0x50] sm:$0xff] %vm30, %v172
  %189 = vst.msk [vmem:[%s3 + $0x58] sm:$0xff] %vm30, %v173
  %190 = vst.msk [vmem:[%s3 + $0x60] sm:$0xff] %vm30, %v174
  %191 = vst.msk [vmem:[%s3 + $0x68] sm:$0xff] %vm30, %v175
  %192 = vst.msk [vmem:[%s3 + $0x70] sm:$0xff] %vm30, %v176
  %193 = vst.msk [vmem:[%s3 + $0x78] sm:$0xff] %vm30, %v177
  // Predicated region
  $region14: #{tpu_custom_call.1} parent=0 // pred_check
    _
  $region15: #{tpu_custom_call.1} parent=0 // pred_check_branch
    %195 = sbr.rel (0) target = $region17
  $region16: #{tpu_custom_call.1} parent=0 // pred_region
    _
  $region17: #{tpu_custom_call.1} parent=0 // pred_fallthru
    _
  // Predicated region
  $region18: #{tpu_custom_call.1} parent=0 // pred_check
    _
  $region19: #{tpu_custom_call.1} parent=0 // pred_check_branch
    %197 = sbr.rel (0) target = $region21
  $region20: #{tpu_custom_call.1} parent=0 // pred_region
    _
  $region21: #{tpu_custom_call.1} parent=0 // pred_fallthru
    _

</llo_original>
